<compile_context>
chip_gen: v6e
topology: v6e:2x2x1
jax: 0.10.0
libtpu: 0.0.40
codegen_flags: <defaults>
</compile_context>

<pallas_src>
import math
import numpy as np
import jax
import jax.numpy as jnp
from jax.experimental import pallas as pl
from jax.experimental.pallas import tpu as pltpu


def eca_kernel_size(channel, b=1, gamma=2):
    k = int(abs((math.log(channel, 2) + b) / gamma))
    return k if k % 2 else k + 1


def _tpu_vmem_capacity_bytes():
    """Best-effort query of per-core VMEM capacity; conservative fallback."""
    try:
        info = pltpu.get_tpu_info()
        return int(info.vmem_capacity_bytes)
    except Exception:
        return 64 << 20  # assume v7x-sized VMEM if the query is unavailable


def _choose_batch_block(N, C, HW, itemsize):
    """Generation-aware choice of samples-per-grid-step and VMEM limit."""
    vmem_cap = _tpu_vmem_capacity_bytes()
    if vmem_cap >= (96 << 20):
        # v5e / v6e: 128 MiB VMEM, single TensorCore.  Biggest tiles win;
        # grid=(1,) is fine since the grid is just a sequential loop on 1 TC.
        block_budget = 48 << 20
        vmem_limit = 100 << 20
        num_tc = 1
    else:
        # v7x: 64 MiB VMEM per TC, 2 TensorCores.  Keep >=2 balanced steps.
        block_budget = 24 << 20
        vmem_limit = 48 << 20
        num_tc = 2

    per_sample = C * HW * itemsize
    # Resident bytes per packed sample: input + output blocks (each
    # double-buffered -> ~4x) plus the x_ch intermediate kept live through the
    # spatial conv and the small flat temps -> budget ~6x per-sample bytes.
    max_nb = max(1, block_budget // (6 * per_sample))

    divisors = [d for d in range(1, N + 1) if N % d == 0]
    feasible = [d for d in divisors if d <= max_nb] or [1]
    nb = max(feasible)
    if num_tc > 1:
        # Prefer a grid length that is a multiple of the TC count so both
        # TensorCores get balanced work.
        balanced = [d for d in feasible if (N // d) % num_tc == 0]
        if balanced:
            nb = max(balanced)
    # TODO(synk): if a single sample ever exceeds the budget (6*per_sample >
    # block_budget), add an HW/C tiling path with a 1-row halo for the 3x3 conv.
    return nb, vmem_limit


def _make_attention_kernel(C, H, W, k_eca, nb):
    HW = H * W
    pad_e = (k_eca - 1) // 2
    inv_hw = 1.0 / float(HW)
    inv_c = 1.0 / float(C)
    cstep = min(C, 8)  # one sublane-group of channels per fused-reduction step

    def kernel(x_ref, eca_w_ref, sp_w_ref, sp_b_ref, o_ref):
        x = x_ref[...]                                   # (nb, C, HW) f32

        # ---------------- ECA channel attention ----------------
        # global average pool over H*W: lane reduce + constant reciprocal
        pooled = jnp.sum(x, axis=2) * inv_hw             # (nb, C)

        # 1-D conv over the channel dim (no bias), zero padding (tiny).
        ew = [eca_w_ref[j] for j in range(k_eca)]        # hoisted SMEM reads
        if pad_e > 0:
            zpad = jnp.zeros((nb, pad_e), dtype=jnp.float32)
            padded = jnp.concatenate([zpad, pooled, zpad], axis=1)
        else:
            padded = pooled
        y = ew[0] * padded[:, 0:C]
        for j in range(1, k_eca):
            y = y + ew[j] * padded[:, j:j + C]
        scale = jax.nn.sigmoid(y)                        # (nb, C)

        # ------- fused channel scaling + max/mean reductions (one pass) -----
        # x_ch chunks stay live and are reused at the final store, so x is
        # only read once and the final store is a single multiply.
        x_ch_chunks = []
        mx = None
        sm = None
        for c0 in range(0, C, cstep):
            c1 = min(C, c0 + cstep)
            chunk = x[:, c0:c1, :] * scale[:, c0:c1, None]   # (nb, cs, HW)
            x_ch_chunks.append(chunk)
            cmax = jnp.max(chunk, axis=1)                    # (nb, HW)
            csum = jnp.sum(chunk, axis=1)                    # (nb, HW)
            mx = cmax if mx is None else jnp.maximum(mx, cmax)
            sm = csum if sm is None else sm + csum
        max_x = mx                                        # (nb, HW)
        avg_x = sm * inv_c                                # (nb, HW)

        # ---------------- 3x3 spatial conv in flattened layout --------------
        wm = [sp_w_ref[j] for j in range(9)]             # taps for "max" channel
        wa = [sp_w_ref[9 + j] for j in range(9)]         # taps for "avg" channel
        bias = sp_b_ref[0]

        # zero-pad the flat maps so every (dy, dx) tap is a static slice
        zrow = jnp.zeros((nb, W + 1), dtype=jnp.float32)
        pm = jnp.concatenate([zrow, max_x, zrow], axis=1)  # (nb, HW + 2W + 2)
        pa = jnp.concatenate([zrow, avg_x, zrow], axis=1)

        # column-boundary masks (invalid left/right neighbours within a row)
        col = jax.lax.broadcasted_iota(jnp.int32, (1, HW), 1) % W
        mask_l = (col > 0).astype(jnp.float32)           # source col w-1 valid
        mask_r = (col < (W - 1)).astype(jnp.float32)     # source col w+1 valid

        t = jnp.full((nb, HW), bias, dtype=jnp.float32)
        for dx in (-1, 0, 1):
            acc = jnp.zeros((nb, HW), dtype=jnp.float32)
            for dy in (-1, 0, 1):
                j = (dy + 1) * 3 + (dx + 1)
                off = (W + 1) + dy * W + dx
                acc = acc + wm[j] * pm[:, off:off + HW]
                acc = acc + wa[j] * pa[:, off:off + HW]
            if dx == -1:
                acc = acc * mask_l
            elif dx == 1:
                acc = acc * mask_r
            t = t + acc
        sp = jax.nn.sigmoid(t)                           # (nb, HW)
        spb = sp[:, None, :]                             # hoisted broadcast view

        # ----------- final store: (x * scale) * sp, reusing x_ch -----------
        for idx, c0 in enumerate(range(0, C, cstep)):
            c1 = min(C, c0 + cstep)
            o_ref[:, c0:c1, :] = (x_ch_chunks[idx] * spb).astype(o_ref.dtype)

    return kernel


def attention_forward(x, eca_w, sp_w, sp_b):
    N, C, H, W = x.shape
    HW = H * W
    k_eca = eca_w.shape[0]

    # Lane-dense layout: fold H, W into one trailing axis (free, contiguous).
    x_flat = x.reshape(N, C, HW)

    nb, vmem_limit = _choose_batch_block(N, C, HW, itemsize=x.dtype.itemsize)
    kernel = _make_attention_kernel(C, H, W, k_eca, nb)

    out_flat = pl.pallas_call(
        kernel,
        out_shape=jax.ShapeDtypeStruct((N, C, HW), x.dtype),
        grid=(N // nb,),
        in_specs=[
            pl.BlockSpec((nb, C, HW), lambda b: (b, 0, 0)),
            pl.BlockSpec(memory_space=pltpu.MemorySpace.SMEM),  # eca conv1d weights
            pl.BlockSpec(memory_space=pltpu.MemorySpace.SMEM),  # 3x3 conv weights (flat, 18)
            pl.BlockSpec(memory_space=pltpu.MemorySpace.SMEM),  # 3x3 conv bias (1,)
        ],
        out_specs=pl.BlockSpec((nb, C, HW), lambda b: (b, 0, 0)),
        compiler_params=pltpu.CompilerParams(
            dimension_semantics=("parallel",),
            vmem_limit_bytes=int(vmem_limit),
        ),
    )(x_flat, eca_w, sp_w, sp_b)

    return out_flat.reshape(N, C, H, W)


def reference(x, eca_w, sp_w, sp_b):
    """Pure-JAX reference reproducing the PyTorch forward."""
    N, C, H, W = x.shape
    k = eca_w.shape[0]
    pad = (k - 1) // 2
    pooled = jnp.mean(x, axis=(2, 3))                              # (N, C)
    pooled_p = jnp.pad(pooled, ((0, 0), (pad, pad)))
    y = sum(eca_w[j] * pooled_p[:, j:j + C] for j in range(k))
    x_ch = x * jax.nn.sigmoid(y)[:, :, None, None]
    max_x = jnp.max(x_ch, axis=1)
    avg_x = jnp.mean(x_ch, axis=1)
    pm = jnp.pad(max_x, ((0, 0), (1, 1), (1, 1)))
    pa = jnp.pad(avg_x, ((0, 0), (1, 1), (1, 1)))
    w = sp_w.reshape(2, 3, 3)
    t = jnp.full((N, H, W), sp_b[0])
    for dy in range(3):
        for dx in range(3):
            t = t + w[0, dy, dx] * pm[:, dy:dy + H, dx:dx + W]
            t = t + w[1, dy, dx] * pa[:, dy:dy + H, dx:dx + W]
    return x_ch * jax.nn.sigmoid(t)[:, None, :, :]


if __name__ == "__main__":
    N, C, H, W = 2, 8, 16, 16
    k_eca = eca_kernel_size(C)        # = 3 for C=8

    key = jax.random.PRNGKey(0)
    kx, k1, k2, k3 = jax.random.split(key, 4)

    x = jax.random.normal(kx, (N, C, H, W), dtype=jnp.float32)

    # Deterministic parameter init (synthetic; shapes match the PyTorch module).
    # eca_block.conv: Conv1d(1, 1, k_eca, bias=False) -> (k_eca,)
    eca_w = (jax.random.uniform(k1, (k_eca,), dtype=jnp.float32) - 0.5) * 1.0
    # Spatial_attention.conv: Conv2d(2, 1, 3, padding=1) -> weight (2*3*3,), bias (1,)
    sp_w = (jax.random.uniform(k2, (2 * 3 * 3,), dtype=jnp.float32) - 0.5) * 0.5
    sp_b = (jax.random.uniform(k3, (1,), dtype=jnp.float32) - 0.5) * 0.5

    out = attention_forward(x, eca_w, sp_w, sp_b)
    out = jax.block_until_ready(out)

    ref = jax.block_until_ready(reference(x, eca_w, sp_w, sp_b))
    assert out.shape == (N, C, H, W)
    np.testing.assert_allclose(np.asarray(out), np.asarray(ref), rtol=1e-5, atol=1e-5)

    print("KERNEL_OK")
</pallas_src>

<mosaic_0001>
module attributes {stable_mosaic.version = 11 : i64} {
  func.func @kernel(%arg0: i32, %arg1: memref<1x8x256xf32, #tpu.memory_space<vmem>>, %arg2: memref<3xf32, #tpu.memory_space<smem>>, %arg3: memref<18xf32, #tpu.memory_space<smem>>, %arg4: memref<1xf32, #tpu.memory_space<smem>>, %arg5: memref<1x8x256xf32, #tpu.memory_space<vmem>>) attributes {dimension_semantics = [#tpu.dimension_semantics<parallel>], iteration_bounds = array<i64: 2>, scalar_prefetch = 0 : i64, scratch_operands = 0 : i64, tpu.core_type = #tpu.core_type<tc>, window_params = [{transform_indices = @transform_0, window_bounds = array<i64: 1, 8, 256>}, {transform_indices = @transform_1, window_bounds = array<i64: 3>}, {transform_indices = @transform_2, window_bounds = array<i64: 18>}, {transform_indices = @transform_3, window_bounds = array<i64: 1>}, {transform_indices = @transform_4, window_bounds = array<i64: 1, 8, 256>}]} {
    %c0 = arith.constant 0 : index
    %c0_0 = arith.constant 0 : index
    %c0_1 = arith.constant 0 : index
    %0 = vector.load %arg1[%c0, %c0_0, %c0_1] : memref<1x8x256xf32, #tpu.memory_space<vmem>>, vector<1x8x256xf32>
    %cst = arith.constant dense<0.000000e+00> : vector<1x8xf32>
    %1 = vector.multi_reduction <add>, %0, %cst [2] : vector<1x8x256xf32> to vector<1x8xf32>
    %cst_2 = arith.constant 3.906250e-03 : f32
    %2 = vector.broadcast %cst_2 : f32 to vector<1x8xf32>
    %3 = arith.mulf %1, %2 : vector<1x8xf32>
    %c0_3 = arith.constant 0 : index
    %4 = memref.load %arg2[%c0_3] : memref<3xf32, #tpu.memory_space<smem>>
    %c1 = arith.constant 1 : index
    %5 = memref.load %arg2[%c1] : memref<3xf32, #tpu.memory_space<smem>>
    %c2 = arith.constant 2 : index
    %6 = memref.load %arg2[%c2] : memref<3xf32, #tpu.memory_space<smem>>
    %cst_4 = arith.constant 0.000000e+00 : f32
    %7 = vector.broadcast %cst_4 : f32 to vector<1x1xf32>
    %8 = tpu.concatenate %7, %3, %7 in 1 : vector<1x1xf32>, vector<1x8xf32>, vector<1x1xf32> -> vector<1x10xf32>
    %9 = vector.extract_strided_slice %8 {offsets = [0, 0], sizes = [1, 8], strides = [1, 1]} : vector<1x10xf32> to vector<1x8xf32>
    %10 = vector.broadcast %4 : f32 to vector<1x8xf32>
    %11 = arith.mulf %10, %9 : vector<1x8xf32>
    %12 = vector.extract_strided_slice %8 {offsets = [0, 1], sizes = [1, 8], strides = [1, 1]} : vector<1x10xf32> to vector<1x8xf32>
    %13 = vector.broadcast %5 : f32 to vector<1x8xf32>
    %14 = arith.mulf %13, %12 : vector<1x8xf32>
    %15 = arith.addf %11, %14 : vector<1x8xf32>
    %16 = vector.extract_strided_slice %8 {offsets = [0, 2], sizes = [1, 8], strides = [1, 1]} : vector<1x10xf32> to vector<1x8xf32>
    %17 = vector.broadcast %6 : f32 to vector<1x8xf32>
    %18 = arith.mulf %17, %16 : vector<1x8xf32>
    %19 = arith.addf %15, %18 : vector<1x8xf32>
    %20 = arith.negf %19 : vector<1x8xf32>
    %21 = math.exp %20 : vector<1x8xf32>
    %cst_5 = arith.constant 1.000000e+00 : f32
    %22 = vector.broadcast %cst_5 : f32 to vector<1x8xf32>
    %23 = arith.addf %22, %21 : vector<1x8xf32>
    %24 = arith.divf %22, %23 : vector<1x8xf32>
    %25 = vector.shape_cast %24 : vector<1x8xf32> to vector<1x8x1xf32>
    %26 = vector.broadcast %25 : vector<1x8x1xf32> to vector<1x8x256xf32>
    %27 = arith.mulf %0, %26 : vector<1x8x256xf32>
    %cst_6 = arith.constant dense<0xFF800000> : vector<1x256xf32>
    %28 = vector.multi_reduction <maximumf>, %27, %cst_6 [1] : vector<1x8x256xf32> to vector<1x256xf32>
    %cst_7 = arith.constant dense<0.000000e+00> : vector<1x256xf32>
    %29 = vector.multi_reduction <add>, %27, %cst_7 [1] : vector<1x8x256xf32> to vector<1x256xf32>
    %cst_8 = arith.constant 1.250000e-01 : f32
    %30 = vector.broadcast %cst_8 : f32 to vector<1x256xf32>
    %31 = arith.mulf %29, %30 : vector<1x256xf32>
    %c0_9 = arith.constant 0 : index
    %32 = memref.load %arg3[%c0_9] : memref<18xf32, #tpu.memory_space<smem>>
    %c1_10 = arith.constant 1 : index
    %33 = memref.load %arg3[%c1_10] : memref<18xf32, #tpu.memory_space<smem>>
    %c2_11 = arith.constant 2 : index
    %34 = memref.load %arg3[%c2_11] : memref<18xf32, #tpu.memory_space<smem>>
    %c3 = arith.constant 3 : index
    %35 = memref.load %arg3[%c3] : memref<18xf32, #tpu.memory_space<smem>>
    %c4 = arith.constant 4 : index
    %36 = memref.load %arg3[%c4] : memref<18xf32, #tpu.memory_space<smem>>
    %c5 = arith.constant 5 : index
    %37 = memref.load %arg3[%c5] : memref<18xf32, #tpu.memory_space<smem>>
    %c6 = arith.constant 6 : index
    %38 = memref.load %arg3[%c6] : memref<18xf32, #tpu.memory_space<smem>>
    %c7 = arith.constant 7 : index
    %39 = memref.load %arg3[%c7] : memref<18xf32, #tpu.memory_space<smem>>
    %c8 = arith.constant 8 : index
    %40 = memref.load %arg3[%c8] : memref<18xf32, #tpu.memory_space<smem>>
    %c9 = arith.constant 9 : index
    %41 = memref.load %arg3[%c9] : memref<18xf32, #tpu.memory_space<smem>>
    %c10 = arith.constant 10 : index
    %42 = memref.load %arg3[%c10] : memref<18xf32, #tpu.memory_space<smem>>
    %c11 = arith.constant 11 : index
    %43 = memref.load %arg3[%c11] : memref<18xf32, #tpu.memory_space<smem>>
    %c12 = arith.constant 12 : index
    %44 = memref.load %arg3[%c12] : memref<18xf32, #tpu.memory_space<smem>>
    %c13 = arith.constant 13 : index
    %45 = memref.load %arg3[%c13] : memref<18xf32, #tpu.memory_space<smem>>
    %c14 = arith.constant 14 : index
    %46 = memref.load %arg3[%c14] : memref<18xf32, #tpu.memory_space<smem>>
    %c15 = arith.constant 15 : index
    %47 = memref.load %arg3[%c15] : memref<18xf32, #tpu.memory_space<smem>>
    %c16 = arith.constant 16 : index
    %48 = memref.load %arg3[%c16] : memref<18xf32, #tpu.memory_space<smem>>
    %c17 = arith.constant 17 : index
    %49 = memref.load %arg3[%c17] : memref<18xf32, #tpu.memory_space<smem>>
    %c0_12 = arith.constant 0 : index
    %50 = memref.load %arg4[%c0_12] : memref<1xf32, #tpu.memory_space<smem>>
    %cst_13 = arith.constant 0.000000e+00 : f32
    %51 = vector.broadcast %cst_13 : f32 to vector<1x17xf32>
    %52 = tpu.concatenate %51, %28, %51 in 1 : vector<1x17xf32>, vector<1x256xf32>, vector<1x17xf32> -> vector<1x290xf32>
    %53 = tpu.concatenate %51, %31, %51 in 1 : vector<1x17xf32>, vector<1x256xf32>, vector<1x17xf32> -> vector<1x290xf32>
    %54 = tpu.iota {dimensions = array<i32: 1>} : vector<1x256xi32>
    %c16_i32 = arith.constant 16 : i32
    %c0_i32 = arith.constant 0 : i32
    %55 = arith.cmpi eq, %c16_i32, %c0_i32 : i32
    %c1_i32 = arith.constant 1 : i32
    %56 = arith.select %55, %c1_i32, %c16_i32 : i32
    %57 = vector.broadcast %56 : i32 to vector<1x256xi32>
    %58 = arith.remsi %54, %57 : vector<1x256xi32>
    %c0_i32_14 = arith.constant 0 : i32
    %59 = vector.broadcast %c0_i32_14 : i32 to vector<1x256xi32>
    %60 = arith.cmpi ne, %58, %59 : vector<1x256xi32>
    %c0_i32_15 = arith.constant 0 : i32
    %61 = vector.broadcast %c0_i32_15 : i32 to vector<1x256xi32>
    %62 = arith.cmpi slt, %58, %61 : vector<1x256xi32>
    %c0_i32_16 = arith.constant 0 : i32
    %63 = arith.cmpi slt, %56, %c0_i32_16 : i32
    %64 = vector.broadcast %63 : i1 to vector<1x256xi1>
    %65 = vector.broadcast %64 : vector<1x256xi1> to vector<1x256xi1>
    %66 = arith.xori %62, %65 : vector<1x256xi1>
    %67 = arith.andi %66, %60 : vector<1x256xi1>
    %68 = vector.broadcast %56 : i32 to vector<1x256xi32>
    %69 = arith.addi %58, %68 : vector<1x256xi32>
    %70 = arith.select %67, %69, %58 : vector<1x256xi1>, vector<1x256xi32>
    %c0_i32_17 = arith.constant 0 : i32
    %71 = vector.broadcast %c0_i32_17 : i32 to vector<1x256xi32>
    %72 = arith.cmpi sgt, %70, %71 : vector<1x256xi32>
    %73 = arith.extui %72 : vector<1x256xi1> to vector<1x256xi32>
    %74 = arith.sitofp %73 : vector<1x256xi32> to vector<1x256xf32>
    %c15_i32 = arith.constant 15 : i32
    %75 = vector.broadcast %c15_i32 : i32 to vector<1x256xi32>
    %76 = arith.cmpi slt, %70, %75 : vector<1x256xi32>
    %77 = arith.extui %76 : vector<1x256xi1> to vector<1x256xi32>
    %78 = arith.sitofp %77 : vector<1x256xi32> to vector<1x256xf32>
    %79 = vector.broadcast %50 : f32 to vector<1x256xf32>
    %cst_18 = arith.constant 0.000000e+00 : f32
    %80 = vector.broadcast %cst_18 : f32 to vector<1x256xf32>
    %81 = vector.extract_strided_slice %52 {offsets = [0, 0], sizes = [1, 256], strides = [1, 1]} : vector<1x290xf32> to vector<1x256xf32>
    %82 = vector.broadcast %32 : f32 to vector<1x256xf32>
    %83 = arith.mulf %82, %81 : vector<1x256xf32>
    %84 = arith.addf %80, %83 : vector<1x256xf32>
    %85 = vector.extract_strided_slice %53 {offsets = [0, 0], sizes = [1, 256], strides = [1, 1]} : vector<1x290xf32> to vector<1x256xf32>
    %86 = vector.broadcast %41 : f32 to vector<1x256xf32>
    %87 = arith.mulf %86, %85 : vector<1x256xf32>
    %88 = arith.addf %84, %87 : vector<1x256xf32>
    %89 = vector.extract_strided_slice %52 {offsets = [0, 16], sizes = [1, 256], strides = [1, 1]} : vector<1x290xf32> to vector<1x256xf32>
    %90 = vector.broadcast %35 : f32 to vector<1x256xf32>
    %91 = arith.mulf %90, %89 : vector<1x256xf32>
    %92 = arith.addf %88, %91 : vector<1x256xf32>
    %93 = vector.extract_strided_slice %53 {offsets = [0, 16], sizes = [1, 256], strides = [1, 1]} : vector<1x290xf32> to vector<1x256xf32>
    %94 = vector.broadcast %44 : f32 to vector<1x256xf32>
    %95 = arith.mulf %94, %93 : vector<1x256xf32>
    %96 = arith.addf %92, %95 : vector<1x256xf32>
    %97 = vector.extract_strided_slice %52 {offsets = [0, 32], sizes = [1, 256], strides = [1, 1]} : vector<1x290xf32> to vector<1x256xf32>
    %98 = vector.broadcast %38 : f32 to vector<1x256xf32>
    %99 = arith.mulf %98, %97 : vector<1x256xf32>
    %100 = arith.addf %96, %99 : vector<1x256xf32>
    %101 = vector.extract_strided_slice %53 {offsets = [0, 32], sizes = [1, 256], strides = [1, 1]} : vector<1x290xf32> to vector<1x256xf32>
    %102 = vector.broadcast %47 : f32 to vector<1x256xf32>
    %103 = arith.mulf %102, %101 : vector<1x256xf32>
    %104 = arith.addf %100, %103 : vector<1x256xf32>
    %105 = arith.mulf %104, %74 : vector<1x256xf32>
    %106 = arith.addf %79, %105 : vector<1x256xf32>
    %cst_19 = arith.constant 0.000000e+00 : f32
    %107 = vector.broadcast %cst_19 : f32 to vector<1x256xf32>
    %108 = vector.extract_strided_slice %52 {offsets = [0, 1], sizes = [1, 256], strides = [1, 1]} : vector<1x290xf32> to vector<1x256xf32>
    %109 = vector.broadcast %33 : f32 to vector<1x256xf32>
    %110 = arith.mulf %109, %108 : vector<1x256xf32>
    %111 = arith.addf %107, %110 : vector<1x256xf32>
    %112 = vector.extract_strided_slice %53 {offsets = [0, 1], sizes = [1, 256], strides = [1, 1]} : vector<1x290xf32> to vector<1x256xf32>
    %113 = vector.broadcast %42 : f32 to vector<1x256xf32>
    %114 = arith.mulf %113, %112 : vector<1x256xf32>
    %115 = arith.addf %111, %114 : vector<1x256xf32>
    %116 = vector.extract_strided_slice %52 {offsets = [0, 17], sizes = [1, 256], strides = [1, 1]} : vector<1x290xf32> to vector<1x256xf32>
    %117 = vector.broadcast %36 : f32 to vector<1x256xf32>
    %118 = arith.mulf %117, %116 : vector<1x256xf32>
    %119 = arith.addf %115, %118 : vector<1x256xf32>
    %120 = vector.extract_strided_slice %53 {offsets = [0, 17], sizes = [1, 256], strides = [1, 1]} : vector<1x290xf32> to vector<1x256xf32>
    %121 = vector.broadcast %45 : f32 to vector<1x256xf32>
    %122 = arith.mulf %121, %120 : vector<1x256xf32>
    %123 = arith.addf %119, %122 : vector<1x256xf32>
    %124 = vector.extract_strided_slice %52 {offsets = [0, 33], sizes = [1, 256], strides = [1, 1]} : vector<1x290xf32> to vector<1x256xf32>
    %125 = vector.broadcast %39 : f32 to vector<1x256xf32>
    %126 = arith.mulf %125, %124 : vector<1x256xf32>
    %127 = arith.addf %123, %126 : vector<1x256xf32>
    %128 = vector.extract_strided_slice %53 {offsets = [0, 33], sizes = [1, 256], strides = [1, 1]} : vector<1x290xf32> to vector<1x256xf32>
    %129 = vector.broadcast %48 : f32 to vector<1x256xf32>
    %130 = arith.mulf %129, %128 : vector<1x256xf32>
    %131 = arith.addf %127, %130 : vector<1x256xf32>
    %132 = arith.addf %106, %131 : vector<1x256xf32>
    %cst_20 = arith.constant 0.000000e+00 : f32
    %133 = vector.broadcast %cst_20 : f32 to vector<1x256xf32>
    %134 = vector.extract_strided_slice %52 {offsets = [0, 2], sizes = [1, 256], strides = [1, 1]} : vector<1x290xf32> to vector<1x256xf32>
    %135 = vector.broadcast %34 : f32 to vector<1x256xf32>
    %136 = arith.mulf %135, %134 : vector<1x256xf32>
    %137 = arith.addf %133, %136 : vector<1x256xf32>
    %138 = vector.extract_strided_slice %53 {offsets = [0, 2], sizes = [1, 256], strides = [1, 1]} : vector<1x290xf32> to vector<1x256xf32>
    %139 = vector.broadcast %43 : f32 to vector<1x256xf32>
    %140 = arith.mulf %139, %138 : vector<1x256xf32>
    %141 = arith.addf %137, %140 : vector<1x256xf32>
    %142 = vector.extract_strided_slice %52 {offsets = [0, 18], sizes = [1, 256], strides = [1, 1]} : vector<1x290xf32> to vector<1x256xf32>
    %143 = vector.broadcast %37 : f32 to vector<1x256xf32>
    %144 = arith.mulf %143, %142 : vector<1x256xf32>
    %145 = arith.addf %141, %144 : vector<1x256xf32>
    %146 = vector.extract_strided_slice %53 {offsets = [0, 18], sizes = [1, 256], strides = [1, 1]} : vector<1x290xf32> to vector<1x256xf32>
    %147 = vector.broadcast %46 : f32 to vector<1x256xf32>
    %148 = arith.mulf %147, %146 : vector<1x256xf32>
    %149 = arith.addf %145, %148 : vector<1x256xf32>
    %150 = vector.extract_strided_slice %52 {offsets = [0, 34], sizes = [1, 256], strides = [1, 1]} : vector<1x290xf32> to vector<1x256xf32>
    %151 = vector.broadcast %40 : f32 to vector<1x256xf32>
    %152 = arith.mulf %151, %150 : vector<1x256xf32>
    %153 = arith.addf %149, %152 : vector<1x256xf32>
    %154 = vector.extract_strided_slice %53 {offsets = [0, 34], sizes = [1, 256], strides = [1, 1]} : vector<1x290xf32> to vector<1x256xf32>
    %155 = vector.broadcast %49 : f32 to vector<1x256xf32>
    %156 = arith.mulf %155, %154 : vector<1x256xf32>
    %157 = arith.addf %153, %156 : vector<1x256xf32>
    %158 = arith.mulf %157, %78 : vector<1x256xf32>
    %159 = arith.addf %132, %158 : vector<1x256xf32>
    %160 = arith.negf %159 : vector<1x256xf32>
    %161 = math.exp %160 : vector<1x256xf32>
    %cst_21 = arith.constant 1.000000e+00 : f32
    %162 = vector.broadcast %cst_21 : f32 to vector<1x256xf32>
    %163 = arith.addf %162, %161 : vector<1x256xf32>
    %164 = arith.divf %162, %163 : vector<1x256xf32>
    %165 = vector.shape_cast %164 : vector<1x256xf32> to vector<1x1x256xf32>
    %166 = vector.broadcast %165 : vector<1x1x256xf32> to vector<1x8x256xf32>
    %167 = arith.mulf %27, %166 : vector<1x8x256xf32>
    %c0_22 = arith.constant 0 : index
    %c0_23 = arith.constant 0 : index
    %c0_24 = arith.constant 0 : index
    %168 = vector.load %arg5[%c0_22, %c0_23, %c0_24] : memref<1x8x256xf32, #tpu.memory_space<vmem>>, vector<1x8x256xf32>
    tpu.vector_store %arg5[%c0_22, %c0_23, %c0_24], %167 {strides = array<i32>} : memref<1x8x256xf32, #tpu.memory_space<vmem>>, vector<1x8x256xf32>,
    return
  }
  func.func @transform_0(%arg0: i32) -> (i32, i32, i32) {
    %c0_i32 = arith.constant 0 : i32
    %c0_i32_0 = arith.constant 0 : i32
    %c0_i32_1 = arith.constant 0 : i32
    return %arg0, %c0_i32, %c0_i32_0 : i32, i32, i32
  }
  func.func @transform_1(%arg0: i32) -> i32 {
    %c0_i32 = arith.constant 0 : i32
    %c0_i32_0 = arith.constant 0 : i32
    return %c0_i32 : i32
  }
  func.func @transform_2(%arg0: i32) -> i32 {
    %c0_i32 = arith.constant 0 : i32
    %c0_i32_0 = arith.constant 0 : i32
    return %c0_i32 : i32
  }
  func.func @transform_3(%arg0: i32) -> i32 {
    %c0_i32 = arith.constant 0 : i32
    %c0_i32_0 = arith.constant 0 : i32
    return %c0_i32 : i32
  }
  func.func @transform_4(%arg0: i32) -> (i32, i32, i32) {
    %c0_i32 = arith.constant 0 : i32
    %c0_i32_0 = arith.constant 0 : i32
    %c0_i32_1 = arith.constant 0 : i32
    return %arg0, %c0_i32, %c0_i32_0 : i32, i32, i32
  }
}

</mosaic_0001>

<llo_original>
// kernel: tpu_custom_call.1
$region0: #{tpu_custom_call.1}
  #allocation0 [shape = 'u32[]', space=smem, size = 0x4, offset = 0x4, fixed_abs, tag = 'smem constant byte address 0x4 - core index']
  #allocation1 [shape = 'u32[144,128]{1,0:T(1,128)}', space=vmem, size = 0x12000, scoped, tag = 'internal scratch']
  #allocation2 [shape = 'f32[1]{0:T(128)S(6)}', space=smem, size = 0x200, scoped, tag = 'scoped memory for tpu_custom_call.1']
  %s0 = inlined_call_operand.hbm [shape: f32[2,8,256], index: 0, kind: input, shape index: {}]
  %s1 = inlined_call_operand.vmem [shape: f32[3], index: 1, kind: input, shape index: {}]
  %s2 = inlined_call_operand.vmem [shape: f32[18], index: 2, kind: input, shape index: {}]
  %s3 = inlined_call_operand.<no memory space> [shape: f32[1], index: 3, kind: input, shape index: {}]
  %s4 = inlined_call_operand.hbm [shape: f32[2,8,256], index: 4, kind: output, shape index: {}]
  %s5 = sld [smem:[#allocation0]]
  $region61: #{tpu_custom_call.1} parent=0
    _
  %s7 = ssub.s32 1, %s5
  %s8 = scalar_select 0, %s7, %s5
  %9 = sst [smem:[#allocation2]] %s3
  $region1: #{tpu_custom_call.1} parent=0
    #allocation3 [shape = 'u8[16384]{0}', space=vmem, size = 0x4000, scoped, tag = 'input window, operand 0']
    #allocation4 [shape = 's32[2]{0}', space=sflag, size = 0x8, scoped, tag = 'scoped memory for tpu_custom_call.1']
    #allocation5 [shape = 's32[2]{0}', space=sflag, size = 0x8, scoped, tag = 'scoped memory for tpu_custom_call.1']
    #allocation6 [shape = 's32[2]{0}', space=sflag, size = 0x8, scoped, tag = 'scoped memory for tpu_custom_call.1']
    #allocation7 [shape = 'u8[512]{0}', space=smem, size = 0x200, scoped, tag = 'input window, operand 1, single buffered']
    #allocation8 [shape = 'u8[512]{0}', space=smem, size = 0x200, scoped, tag = 'input window, operand 2, single buffered']
    #allocation9 [shape = 's32[1]{0}', space=sflag, size = 0x4, scoped, tag = 'scoped memory for tpu_custom_call.1']
    #allocation10 [shape = 'u8[16384]{0}', space=vmem, size = 0x4000, scoped, tag = 'output window, operand 0']
    %10 = vsyncpa [#allocation4], 0
    %s11 = scalar_lea.sflag [#allocation4], 1
    %12 = vsyncpa %s11, 0
    %13 = vsyncpa [#allocation6], 0
    %14 = vsyncpa [#allocation9], 0
    %15 = vsyncpa [#allocation5], 0
    %s16 = scalar_lea.sflag [#allocation5], 1
    %17 = vsyncpa %s16, 0
    loop: start=0, step=1, limit=4
    $region2: #{tpu_custom_call.1} parent=1 // loop_pre_header
      _
    $region3: #{tpu_custom_call.1} parent=1 // loop_header
      %s19 = sphi 0, %s23
      %p20 = scmp.ge.s32.totalorder %s19, 4
      %s29 = sphi 0, %s31
      %s32 = sphi 0, %s29
      %s33 = sphi 0, %s32
      %s49 = sphi 0, %s33
      %s53 = sphi 0, %s53
      %s55 = sphi 0, %s53
      %s56 = sphi 0, %s55
      %s70 = sphi 0, %s56
      %s74 = sphi 0, %s74
      %s76 = sphi 0, %s74
      %s77 = sphi 0, %s76
      %s91 = sphi 0, %s77
      %s95 = sphi 0, %s95
      %s97 = sphi 0, %s95
      %s98 = sphi 0, %s97
      %s112 = sphi 0, %s98
      %s118 = sphi 0, %s120
      %s121 = sphi 0, %s118
      %s122 = sphi 0, %s121
      %s138 = sphi 0, %s122
    $region4: #{tpu_custom_call.1} parent=1 // loop_header_branch
      %22 = sbr.rel (%p20) target = $region8
    $region5: #{tpu_custom_call.1} parent=1 // loop_body
      %s24 = ssub.s32 %s19, 1
      %s25 = ssub.s32 %s19, 2
      %s26 = sadd.s32 %s19, 1
      %s27 = ssub.s32 %s19, %s26
      %p28 = scmp.eq.s32.totalorder %s27, 0
      %s30 = sadd.s32 %s29, 1
      %s31 = scalar_select %p28, %s29, %s30
      %p34 = pneg %p28
      %p35 = scmp.eq.s32.totalorder %s19, 1
      %p36 = por %p34, %p35
      %p37 = scmp.ne.s32.totalorder %s29, %s32
      %p38 = scmp.eq.s32.totalorder %s19, 0
      %p39 = por %p37, %p38
      %p40 = scmp.ne.s32.totalorder %s29, %s32
      %p41 = scmp.eq.s32.totalorder %s24, 1
      %p42 = por %p40, %p41
      %p43 = scmp.ne.s32.totalorder %s32, %s33
      %p44 = scmp.eq.s32.totalorder %s24, 0
      %p45 = por %p43, %p44
      %p46 = scmp.ne.s32.totalorder %s32, %s33
      %p47 = scmp.eq.s32.totalorder %s25, 1
      %p48 = por %p46, %p47
      %p50 = scmp.ne.s32.totalorder %s33, %s49
      %p51 = scmp.eq.s32.totalorder %s25, 0
      %p52 = por %p50, %p51
      %s54 = sadd.s32 %s53, 1
      %p57 = scmp.eq.s32.totalorder %s19, 1
      %p58 = scmp.ne.s32.totalorder %s53, %s55
      %p59 = scmp.eq.s32.totalorder %s19, 0
      %p60 = por %p58, %p59
      %p61 = scmp.ne.s32.totalorder %s53, %s55
      %p62 = scmp.eq.s32.totalorder %s24, 1
      %p63 = por %p61, %p62
      %p64 = scmp.ne.s32.totalorder %s55, %s56
      %p65 = scmp.eq.s32.totalorder %s24, 0
      %p66 = por %p64, %p65
      %p67 = scmp.ne.s32.totalorder %s55, %s56
      %p68 = scmp.eq.s32.totalorder %s25, 1
      %p69 = por %p67, %p68
      %p71 = scmp.ne.s32.totalorder %s56, %s70
      %p72 = scmp.eq.s32.totalorder %s25, 0
      %p73 = por %p71, %p72
      %s75 = sadd.s32 %s74, 1
      %p78 = scmp.eq.s32.totalorder %s19, 1
      %p79 = scmp.ne.s32.totalorder %s74, %s76
      %p80 = scmp.eq.s32.totalorder %s19, 0
      %p81 = por %p79, %p80
      %p82 = scmp.ne.s32.totalorder %s74, %s76
      %p83 = scmp.eq.s32.totalorder %s24, 1
      %p84 = por %p82, %p83
      %p85 = scmp.ne.s32.totalorder %s76, %s77
      %p86 = scmp.eq.s32.totalorder %s24, 0
      %p87 = por %p85, %p86
      %p88 = scmp.ne.s32.totalorder %s76, %s77
      %p89 = scmp.eq.s32.totalorder %s25, 1
      %p90 = por %p88, %p89
      %p92 = scmp.ne.s32.totalorder %s77, %s91
      %p93 = scmp.eq.s32.totalorder %s25, 0
      %p94 = por %p92, %p93
      %s96 = sadd.s32 %s95, 1
      %p99 = scmp.eq.s32.totalorder %s19, 1
      %p100 = scmp.ne.s32.totalorder %s95, %s97
      %p101 = scmp.eq.s32.totalorder %s19, 0
      %p102 = por %p100, %p101
      %p103 = scmp.ne.s32.totalorder %s95, %s97
      %p104 = scmp.eq.s32.totalorder %s24, 1
      %p105 = por %p103, %p104
      %p106 = scmp.ne.s32.totalorder %s97, %s98
      %p107 = scmp.eq.s32.totalorder %s24, 0
      %p108 = por %p106, %p107
      %p109 = scmp.ne.s32.totalorder %s97, %s98
      %p110 = scmp.eq.s32.totalorder %s25, 1
      %p111 = por %p109, %p110
      %p113 = scmp.ne.s32.totalorder %s98, %s112
      %p114 = scmp.eq.s32.totalorder %s25, 0
      %p115 = por %p113, %p114
      %s116 = ssub.s32 %s19, %s26
      %p117 = scmp.eq.s32.totalorder %s116, 0
      %s119 = sadd.s32 %s118, 1
      %s120 = scalar_select %p117, %s118, %s119
      %p123 = pneg %p117
      %p124 = scmp.eq.s32.totalorder %s19, 1
      %p125 = por %p123, %p124
      %p126 = scmp.ne.s32.totalorder %s118, %s121
      %p127 = scmp.eq.s32.totalorder %s19, 0
      %p128 = por %p126, %p127
      %p129 = scmp.ne.s32.totalorder %s118, %s121
      %p130 = scmp.eq.s32.totalorder %s24, 1
      %p131 = por %p129, %p130
      %p132 = scmp.ne.s32.totalorder %s121, %s122
      %p133 = scmp.eq.s32.totalorder %s24, 0
      %p134 = por %p132, %p133
      %p135 = scmp.ne.s32.totalorder %s121, %s122
      %p136 = scmp.eq.s32.totalorder %s25, 1
      %p137 = por %p135, %p136
      %p139 = scmp.ne.s32.totalorder %s122, %s138
      %p140 = scmp.eq.s32.totalorder %s25, 0
      %p141 = por %p139, %p140
      %p142 = scmp.le.s32.totalorder 1, %s19
      %p143 = scmp.lt.s32.totalorder %s19, 3
      %p144 = pnand %p142, %p143
      %p145 = pneg %p144
      // Predicated region
      $region9: #{tpu_custom_call.1} parent=5 // pred_check
        _
      $region10: #{tpu_custom_call.1} parent=5 // pred_check_branch
        %147 = sbr.rel (%p144) target = $region12
      $region11: #{tpu_custom_call.1} parent=5 // pred_region
        %s148 = ssub.s32 %s19, 1
        // Predicated region
        $region13: #{tpu_custom_call.1} parent=11 // pred_check
          %p149 = pneg %p66
        $region14: #{tpu_custom_call.1} parent=11 // pred_check_branch
          %151 = sbr.rel (%p149) target = $region16
        $region15: #{tpu_custom_call.1} parent=11 // pred_region
          %s153 = ssub.s32 16, 16
          %154 = vsyncadd [#allocation6], %s153
          %s156 = sshll.u32 %s1, 4
          %s157 = int_to_ptr.vmem [resolvable:$true] %s156
          %159 = dma.vmem_to_smem %s157, 16, [#allocation7], [#allocation6]
        $region16: #{tpu_custom_call.1} parent=11 // pred_fallthru
          _
        // Predicated region
        $region17: #{tpu_custom_call.1} parent=11 // pred_check
          %p160 = pneg %p87
        $region18: #{tpu_custom_call.1} parent=11 // pred_check_branch
          %162 = sbr.rel (%p160) target = $region20
        $region19: #{tpu_custom_call.1} parent=11 // pred_region
          %s164 = ssub.s32 16, 16
          %165 = vsyncadd [#allocation9], %s164
          %s167 = sshll.u32 %s2, 4
          %s168 = int_to_ptr.vmem [resolvable:$true] %s167
          %170 = dma.vmem_to_smem %s168, 16, [#allocation8], [#allocation9]
        $region20: #{tpu_custom_call.1} parent=11 // pred_fallthru
          _
        // Predicated region
        $region21: #{tpu_custom_call.1} parent=11 // pred_check
          %p171 = pneg %p108
        $region22: #{tpu_custom_call.1} parent=11 // pred_check_branch
          %173 = sbr.rel (%p171) target = $region24
        $region23: #{tpu_custom_call.1} parent=11 // pred_region
          _
        $region24: #{tpu_custom_call.1} parent=11 // pred_fallthru
          _
      $region12: #{tpu_custom_call.1} parent=5 // pred_fallthru
        _
      %p174 = scmp.lt.s32.totalorder %s19, 2
      // Predicated region
      $region25: #{tpu_custom_call.1} parent=5 // pred_check
        %p175 = pneg %p174
      $region26: #{tpu_custom_call.1} parent=5 // pred_check_branch
        %177 = sbr.rel (%p175) target = $region28
      $region27: #{tpu_custom_call.1} parent=5 // pred_region
        // Predicated region
        $region29: #{tpu_custom_call.1} parent=27 // pred_check
          %p178 = pneg %p39
        $region30: #{tpu_custom_call.1} parent=27 // pred_check_branch
          %180 = sbr.rel (%p178) target = $region32
        $region31: #{tpu_custom_call.1} parent=27 // pred_region
          %s181 = sand.u32 %s29, 1
          %s182 = scalar_lea.sflag [#allocation4], %s181
          %s183 = sand.u32 %s29, 1
          %s184 = smul.addr %s183, 16
          %s185 = scalar_lea.vmem [#allocation3], %s184
          %s187 = ssub.s32 256, 256
          %188 = vsyncadd %s182, %s187
          %s189 = smul.addr %s19, 2
          %s190 = smul.addr %s189, 128
          %s191 = scalar_lea.hbm %s0, %s190
          %s193 = sshll.u32 %s185, 4
          %s194 = int_to_ptr.vmem [resolvable:$true] %s193
          %196 = dma.hbm_to_vmem [thread:$0]  %s191, 256, %s194, %s182
        $region32: #{tpu_custom_call.1} parent=27 // pred_fallthru
          _
      $region28: #{tpu_custom_call.1} parent=5 // pred_fallthru
        _
      %p197 = scmp.le.s32.totalorder 1, %s19
      %p198 = scmp.lt.s32.totalorder %s19, 3
      %p199 = pnand %p197, %p198
      %p200 = pneg %p199
      // Predicated region
      $region33: #{tpu_custom_call.1} parent=5 // pred_check
        _
      $region34: #{tpu_custom_call.1} parent=5 // pred_check_branch
        %202 = sbr.rel (%p199) target = $region36
      $region35: #{tpu_custom_call.1} parent=5 // pred_region
        %s203 = ssub.s32 %s19, 1
        %s204 = sand.u32 %s32, 1
        %s205 = scalar_lea.sflag [#allocation4], %s204
        %s206 = sand.u32 %s32, 1
        %s207 = smul.addr %s206, 16
        %s208 = scalar_lea.vmem [#allocation3], %s207
        // Predicated region
        $region37: #{tpu_custom_call.1} parent=35 // pred_check
          %p209 = pneg %p45
        $region38: #{tpu_custom_call.1} parent=35 // pred_check_branch
          %211 = sbr.rel (%p209) target = $region40
        $region39: #{tpu_custom_call.1} parent=35 // pred_region
          %212 = dma.done %s205, 256
        $region40: #{tpu_custom_call.1} parent=35 // pred_fallthru
          _
        // Predicated region
        $region41: #{tpu_custom_call.1} parent=35 // pred_check
          %p213 = pneg %p66
        $region42: #{tpu_custom_call.1} parent=35 // pred_check_branch
          %215 = sbr.rel (%p213) target = $region44
        $region43: #{tpu_custom_call.1} parent=35 // pred_region
          %216 = dma.done [#allocation6], 16
        $region44: #{tpu_custom_call.1} parent=35 // pred_fallthru
          _
        // Predicated region
        $region45: #{tpu_custom_call.1} parent=35 // pred_check
          %p217 = pneg %p87
        $region46: #{tpu_custom_call.1} parent=35 // pred_check_branch
          %219 = sbr.rel (%p217) target = $region48
        $region47: #{tpu_custom_call.1} parent=35 // pred_region
          %220 = dma.done [#allocation9], 16
        $region48: #{tpu_custom_call.1} parent=35 // pred_fallthru
          _
        %221 = sfence
        %s222 = sand.u32 %s32, 1
        %s223 = scalar_lea.sflag [#allocation4], %s222
        %s224 = sand.u32 %s32, 1
        %s225 = smul.addr %s224, 16
        %s226 = scalar_lea.vmem [#allocation3], %s225
        %p227 = pneg %p45
        %p228 = pneg %p42
        %p229 = pneg %p66
        %p230 = pneg %p63
        %p231 = pneg %p87
        %p232 = pneg %p84
        %p233 = pneg %p108
        %p234 = pneg %p105
        %p235 = pneg %p134
        %p236 = pneg %p131
        %s237 = sand.u32 %s121, 1
        %s238 = scalar_lea.sflag [#allocation5], %s237
        %s239 = sand.u32 %s121, 1
        %s240 = smul.addr %s239, 16
        %s241 = scalar_lea.vmem [#allocation10], %s240
        %v242 = vld [vmem:[%s208] sm:$0xff]
        %v243 = vld [vmem:[%s208 + $0x8] sm:$0xff]
        %v244 = vadd.f32 %v242, %v243
        %245 = vadd.xlane.f32.xlu0 %v244
        %v246 = vpop.xlane.xlu0 %245
        %v247 = vmul.f32 %v246, 0.00390625
        %s248 = sld [smem:[#allocation7]]
        %s249 = sld [smem:[#allocation7 + $0x1]]
        %s250 = sld [smem:[#allocation7 + $0x2]]
        %v252 = vlaneseq
        %v253 = vand.u32 %v252, 127
        %v254 = vadd.s32 %v253, 4294967295
        %v255 = vlaneseq
        %v256 = vshrl.u32 %v255, 7
        %v257 = vsub.s32 %v254, %v256
        %v258 = vrot.slane %v247, %v257
        %vm260 = vcmask 7168
        %v261 = vsel %vm260, 0.0, %v258
        %vm262 = vcmask 72704
        %v263 = vsel %vm262, %v261, 0.0
        %v264 = vstv %s248
        %v265 = vmul.f32 %v264, %v263
        %v266 = vstv %s249
        %v267 = vmul.f32 %v266, %v263
        %269 = vrot.lane.b32.xlu0 %v267, 127
        %v270 = vpop.permute.xlu0 %269
        %v272 = vadd.f32 %v265, %v270
        %v273 = vstv %s250
        %v274 = vmul.f32 %v273, %v263
        %276 = vrot.lane.b32.xlu0 %v274, 126
        %v277 = vpop.permute.xlu0 %276
        %v279 = vadd.f32 %v272, %v277
        %v280 = vxor.u32 %v279, 2147483648
        %v281 = vmul.f32 %v280, 1.442695
        %v282 = vpow.pop %v281
        %v283 = vadd.f32 %v282, 1.0
        %v284 = vrcp.pop %v283
        %v285 = vmul.f32 1.0, %v284
        %v286 = vlaneseq
        %v287 = vshrl.u32 %v286, 7
        %v288 = vsub.s32 0, %v287
        %v289 = vrot.slane %v285, %v288
        %291 = vbcast.lane.b32.xlu0 %v289, 256
        %v292 = vpop.permute.xlu0 %291
        %v293 = vmul.f32 %v242, %v292
        %v294 = vmul.f32 %v243, %v292
        %v295 = vrot.slane %v293, 4
        %v296 = vmax.f32 %v293, %v295
        %v297 = vrot.slane %v296, 2
        %v298 = vmax.f32 %v296, %v297
        %v299 = vrot.slane %v298, 1
        %v300 = vmax.f32 %v298, %v299
        %v301 = vrot.slane %v294, 4
        %v302 = vmax.f32 %v294, %v301
        %v303 = vrot.slane %v302, 2
        %v304 = vmax.f32 %v302, %v303
        %v305 = vrot.slane %v304, 1
        %v306 = vmax.f32 %v304, %v305
        %v307 = vrot.slane %v293, 4
        %v308 = vadd.f32 %v293, %v307
        %v309 = vrot.slane %v308, 2
        %v310 = vadd.f32 %v308, %v309
        %v311 = vrot.slane %v310, 1
        %v312 = vadd.f32 %v310, %v311
        %v313 = vrot.slane %v294, 4
        %v314 = vadd.f32 %v294, %v313
        %v315 = vrot.slane %v314, 2
        %v316 = vadd.f32 %v314, %v315
        %v317 = vrot.slane %v316, 1
        %v318 = vadd.f32 %v316, %v317
        %v319 = vmul.f32 %v312, 0.125
        %v320 = vmul.f32 %v318, 0.125
        %s321 = sld [smem:[#allocation8]]
        %s322 = sld [smem:[#allocation8 + $0x1]]
        %s323 = sld [smem:[#allocation8 + $0x2]]
        %s324 = sld [smem:[#allocation8 + $0x3]]
        %s325 = sld [smem:[#allocation8 + $0x4]]
        %s326 = sld [smem:[#allocation8 + $0x5]]
        %s327 = sld [smem:[#allocation8 + $0x6]]
        %s328 = sld [smem:[#allocation8 + $0x7]]
        %s329 = sld [smem:[#allocation8 + $0x8]]
        %s330 = sld [smem:[#allocation8 + $0x9]]
        %s331 = sld [smem:[#allocation8 + $0xa]]
        %s332 = sld [smem:[#allocation8 + $0xb]]
        %s333 = sld [smem:[#allocation8 + $0xc]]
        %s334 = sld [smem:[#allocation8 + $0xd]]
        %s335 = sld [smem:[#allocation8 + $0xe]]
        %s336 = sld [smem:[#allocation8 + $0xf]]
        %s337 = sld [smem:[#allocation8 + $0x10]]
        %s338 = sld [smem:[#allocation8 + $0x11]]
        %s339 = sld [smem:[#allocation2]]
        %342 = vrot.lane.b32.xlu0 %v300, 17
        %v343 = vpop.permute.xlu0 %342
        %344 = vrot.lane.b32.xlu0 %v306, 17
        %v345 = vpop.permute.xlu0 %344
        %vm346 = vcmask 138240
        %v347 = vsel %vm346, %v343, %v345
        %v351 = vsel %vm346, 0.0, %v343
        %v352 = vsel %vm346, %v345, 0.0
        %355 = vrot.lane.b32.xlu0 %v319, 17
        %v356 = vpop.permute.xlu0 %355
        %357 = vrot.lane.b32.xlu0 %v320, 17
        %v358 = vpop.permute.xlu0 %357
        %v359 = vsel %vm346, %v356, %v358
        %v363 = vsel %vm346, 0.0, %v356
        %v364 = vsel %vm346, %v358, 0.0
        %v365 = vadd.s32 %v253, 128
        %vm366 = vcmp.lt.s32.totalorder %v253, 0
        %v367 = vsub.s32 0, %v253
        %v368 = vsel %vm366, %v367, %v253
        %v369 = vshrl.u32 %v368, 4
        %v370 = vand.u32 %v368, 15
        %v371 = vsub.s32 0, %v370
        %v372 = vsel %vm366, %v371, %v370
        %vm373 = vcmp.lt.s32.totalorder %v365, 0
        %v374 = vsub.s32 0, %v365
        %v375 = vsel %vm373, %v374, %v365
        %v376 = vshrl.u32 %v375, 4
        %v377 = vand.u32 %v375, 15
        %v378 = vsub.s32 0, %v377
        %v379 = vsel %vm373, %v378, %v377
        %vm380 = vcmp.ne.s32.totalorder %v372, 0
        %vm381 = vcmp.ne.s32.totalorder %v379, 0
        %vm382 = vcmp.lt.s32.totalorder %v372, 0
        %vm383 = vcmp.lt.s32.totalorder %v379, 0
        %vm384 = vmand %vm382, %vm380
        %vm385 = vmand %vm383, %vm381
        %v386 = vadd.s32 %v372, 16
        %v387 = vadd.s32 %v379, 16
        %v388 = vsel %vm384, %v386, %v372
        %v389 = vsel %vm385, %v387, %v379
        %vm390 = vcmp.gt.s32.totalorder %v388, 0
        %vm391 = vcmp.gt.s32.totalorder %v389, 0
        %v392 = vsel %vm390, 1, 0
        %v393 = vsel %vm391, 1, 0
        %v394 = vcvt.s32.f32 %v392
        %v395 = vcvt.s32.f32 %v393
        %vm396 = vcmp.lt.s32.totalorder %v388, 15
        %vm397 = vcmp.lt.s32.totalorder %v389, 15
        %v398 = vsel %vm396, 1, 0
        %v399 = vsel %vm397, 1, 0
        %v400 = vcvt.s32.f32 %v398
        %v401 = vcvt.s32.f32 %v399
        %v402 = vstv %s339
        %v403 = vstv %s321
        %v404 = vmul.f32 %v403, %v351
        %v405 = vmul.f32 %v403, %v347
        %v406 = vadd.f32 %v404, 0.0
        %v407 = vadd.f32 %v405, 0.0
        %v408 = vstv %s330
        %v409 = vmul.f32 %v408, %v363
        %v410 = vmul.f32 %v408, %v359
        %v411 = vadd.f32 %v406, %v409
        %v412 = vadd.f32 %v407, %v410
        %v413 = vstv %s324
        %v414 = vmul.f32 %v413, %v351
        %v415 = vmul.f32 %v413, %v347
        %v416 = vmul.f32 %v413, %v352
        %420 = vrot.lane.b32.xlu0 %v414, 112
        %v421 = vpop.permute.xlu0 %420
        %422 = vrot.lane.b32.xlu0 %v415, 112
        %v423 = vpop.permute.xlu0 %422
        %424 = vrot.lane.b32.xlu0 %v416, 112
        %v425 = vpop.permute.xlu0 %424
        %vm426 = vcmask 916480
        %v427 = vsel %vm426, %v421, %v423
        %v428 = vsel %vm426, %v423, %v425
        %v431 = vadd.f32 %v411, %v427
        %v432 = vadd.f32 %v412, %v428
        %v433 = vstv %s333
        %v434 = vmul.f32 %v433, %v363
        %v435 = vmul.f32 %v433, %v359
        %v436 = vmul.f32 %v433, %v364
        %440 = vrot.lane.b32.xlu0 %v434, 112
        %v441 = vpop.permute.xlu0 %440
        %442 = vrot.lane.b32.xlu0 %v435, 112
        %v443 = vpop.permute.xlu0 %442
        %444 = vrot.lane.b32.xlu0 %v436, 112
        %v445 = vpop.permute.xlu0 %444
        %v446 = vsel %vm426, %v441, %v443
        %v447 = vsel %vm426, %v443, %v445
        %v450 = vadd.f32 %v431, %v446
        %v451 = vadd.f32 %v432, %v447
        %v452 = vstv %s327
        %v453 = vmul.f32 %v452, %v351
        %v454 = vmul.f32 %v452, %v347
        %v455 = vmul.f32 %v452, %v352
        %459 = vrot.lane.b32.xlu0 %v453, 96
        %v460 = vpop.permute.xlu0 %459
        %461 = vrot.lane.b32.xlu0 %v454, 96
        %v462 = vpop.permute.xlu0 %461
        %463 = vrot.lane.b32.xlu0 %v455, 96
        %v464 = vpop.permute.xlu0 %463
        %vm465 = vcmask 785408
        %v466 = vsel %vm465, %v460, %v462
        %v467 = vsel %vm465, %v462, %v464
        %v470 = vadd.f32 %v450, %v466
        %v471 = vadd.f32 %v451, %v467
        %v472 = vstv %s336
        %v473 = vmul.f32 %v472, %v363
        %v474 = vmul.f32 %v472, %v359
        %v475 = vmul.f32 %v472, %v364
        %479 = vrot.lane.b32.xlu0 %v473, 96
        %v480 = vpop.permute.xlu0 %479
        %481 = vrot.lane.b32.xlu0 %v474, 96
        %v482 = vpop.permute.xlu0 %481
        %483 = vrot.lane.b32.xlu0 %v475, 96
        %v484 = vpop.permute.xlu0 %483
        %v485 = vsel %vm465, %v480, %v482
        %v486 = vsel %vm465, %v482, %v484
        %v489 = vadd.f32 %v470, %v485
        %v490 = vadd.f32 %v471, %v486
        %v491 = vmul.f32 %v489, %v394
        %v492 = vmul.f32 %v490, %v395
        %v493 = vadd.f32 %v402, %v491
        %v494 = vadd.f32 %v402, %v492
        %v495 = vstv %s322
        %v496 = vmul.f32 %v495, %v351
        %v497 = vmul.f32 %v495, %v347
        %v498 = vmul.f32 %v495, %v352
        %v499 = vadd.f32 %v496, 0.0
        %v500 = vadd.f32 %v497, 0.0
        %v501 = vadd.f32 %v498, 0.0
        %v502 = vstv %s331
        %v503 = vmul.f32 %v502, %v363
        %v504 = vmul.f32 %v502, %v359
        %v505 = vmul.f32 %v502, %v364
        %v506 = vadd.f32 %v499, %v503
        %v507 = vadd.f32 %v500, %v504
        %v508 = vadd.f32 %v501, %v505
        %v509 = vstv %s325
        %v510 = vmul.f32 %v509, %v351
        %v511 = vmul.f32 %v509, %v347
        %v512 = vmul.f32 %v509, %v352
        %516 = vrot.lane.b32.xlu0 %v510, 112
        %v517 = vpop.permute.xlu0 %516
        %518 = vrot.lane.b32.xlu0 %v511, 112
        %v519 = vpop.permute.xlu0 %518
        %520 = vrot.lane.b32.xlu0 %v512, 112
        %v521 = vpop.permute.xlu0 %520
        %v522 = vsel %vm426, %v517, %v519
        %v523 = vsel %vm426, %v519, %v521
        %v527 = vadd.f32 %v506, %v522
        %v528 = vadd.f32 %v507, %v523
        %v529 = vadd.f32 %v508, %v521
        %v530 = vstv %s334
        %v531 = vmul.f32 %v530, %v363
        %v532 = vmul.f32 %v530, %v359
        %v533 = vmul.f32 %v530, %v364
        %537 = vrot.lane.b32.xlu0 %v531, 112
        %v538 = vpop.permute.xlu0 %537
        %539 = vrot.lane.b32.xlu0 %v532, 112
        %v540 = vpop.permute.xlu0 %539
        %541 = vrot.lane.b32.xlu0 %v533, 112
        %v542 = vpop.permute.xlu0 %541
        %v543 = vsel %vm426, %v538, %v540
        %v544 = vsel %vm426, %v540, %v542
        %v548 = vadd.f32 %v527, %v543
        %v549 = vadd.f32 %v528, %v544
        %v550 = vadd.f32 %v529, %v542
        %v551 = vstv %s328
        %v552 = vmul.f32 %v551, %v351
        %v553 = vmul.f32 %v551, %v347
        %v554 = vmul.f32 %v551, %v352
        %558 = vrot.lane.b32.xlu0 %v552, 96
        %v559 = vpop.permute.xlu0 %558
        %560 = vrot.lane.b32.xlu0 %v553, 96
        %v561 = vpop.permute.xlu0 %560
        %562 = vrot.lane.b32.xlu0 %v554, 96
        %v563 = vpop.permute.xlu0 %562
        %v564 = vsel %vm465, %v559, %v561
        %v565 = vsel %vm465, %v561, %v563
        %v569 = vadd.f32 %v548, %v564
        %v570 = vadd.f32 %v549, %v565
        %v571 = vadd.f32 %v550, %v563
        %v572 = vstv %s337
        %v573 = vmul.f32 %v572, %v363
        %v574 = vmul.f32 %v572, %v359
        %v575 = vmul.f32 %v572, %v364
        %579 = vrot.lane.b32.xlu0 %v573, 96
        %v580 = vpop.permute.xlu0 %579
        %581 = vrot.lane.b32.xlu0 %v574, 96
        %v582 = vpop.permute.xlu0 %581
        %583 = vrot.lane.b32.xlu0 %v575, 96
        %v584 = vpop.permute.xlu0 %583
        %v585 = vsel %vm465, %v580, %v582
        %v586 = vsel %vm465, %v582, %v584
        %v590 = vadd.f32 %v569, %v585
        %v591 = vadd.f32 %v570, %v586
        %v592 = vadd.f32 %v571, %v584
        %596 = vrot.lane.b32.xlu0 %v590, 127
        %v597 = vpop.permute.xlu0 %596
        %598 = vrot.lane.b32.xlu0 %v591, 127
        %v599 = vpop.permute.xlu0 %598
        %600 = vrot.lane.b32.xlu0 %v592, 127
        %v601 = vpop.permute.xlu0 %600
        %vm602 = vcmask 1039360
        %v603 = vsel %vm602, %v597, %v599
        %v604 = vsel %vm602, %v599, %v601
        %v607 = vadd.f32 %v493, %v603
        %v608 = vadd.f32 %v494, %v604
        %v609 = vstv %s323
        %v610 = vmul.f32 %v609, %v351
        %v611 = vmul.f32 %v609, %v347
        %v612 = vmul.f32 %v609, %v352
        %v613 = vadd.f32 %v610, 0.0
        %v614 = vadd.f32 %v611, 0.0
        %v615 = vadd.f32 %v612, 0.0
        %v616 = vstv %s332
        %v617 = vmul.f32 %v616, %v363
        %v618 = vmul.f32 %v616, %v359
        %v619 = vmul.f32 %v616, %v364
        %v620 = vadd.f32 %v613, %v617
        %v621 = vadd.f32 %v614, %v618
        %v622 = vadd.f32 %v615, %v619
        %v623 = vstv %s326
        %v624 = vmul.f32 %v623, %v351
        %v625 = vmul.f32 %v623, %v347
        %v626 = vmul.f32 %v623, %v352
        %630 = vrot.lane.b32.xlu0 %v624, 112
        %v631 = vpop.permute.xlu0 %630
        %632 = vrot.lane.b32.xlu0 %v625, 112
        %v633 = vpop.permute.xlu0 %632
        %634 = vrot.lane.b32.xlu0 %v626, 112
        %v635 = vpop.permute.xlu0 %634
        %v636 = vsel %vm426, %v631, %v633
        %v637 = vsel %vm426, %v633, %v635
        %v641 = vadd.f32 %v620, %v636
        %v642 = vadd.f32 %v621, %v637
        %v643 = vadd.f32 %v622, %v635
        %v644 = vstv %s335
        %v645 = vmul.f32 %v644, %v363
        %v646 = vmul.f32 %v644, %v359
        %v647 = vmul.f32 %v644, %v364
        %651 = vrot.lane.b32.xlu0 %v645, 112
        %v652 = vpop.permute.xlu0 %651
        %653 = vrot.lane.b32.xlu0 %v646, 112
        %v654 = vpop.permute.xlu0 %653
        %655 = vrot.lane.b32.xlu0 %v647, 112
        %v656 = vpop.permute.xlu0 %655
        %v657 = vsel %vm426, %v652, %v654
        %v658 = vsel %vm426, %v654, %v656
        %v662 = vadd.f32 %v641, %v657
        %v663 = vadd.f32 %v642, %v658
        %v664 = vadd.f32 %v643, %v656
        %v665 = vstv %s329
        %v666 = vmul.f32 %v665, %v351
        %v667 = vmul.f32 %v665, %v347
        %v668 = vmul.f32 %v665, %v352
        %672 = vrot.lane.b32.xlu0 %v666, 96
        %v673 = vpop.permute.xlu0 %672
        %674 = vrot.lane.b32.xlu0 %v667, 96
        %v675 = vpop.permute.xlu0 %674
        %676 = vrot.lane.b32.xlu0 %v668, 96
        %v677 = vpop.permute.xlu0 %676
        %v678 = vsel %vm465, %v673, %v675
        %v679 = vsel %vm465, %v675, %v677
        %v683 = vadd.f32 %v662, %v678
        %v684 = vadd.f32 %v663, %v679
        %v685 = vadd.f32 %v664, %v677
        %v686 = vstv %s338
        %v687 = vmul.f32 %v686, %v363
        %v688 = vmul.f32 %v686, %v359
        %v689 = vmul.f32 %v686, %v364
        %693 = vrot.lane.b32.xlu0 %v687, 96
        %v694 = vpop.permute.xlu0 %693
        %695 = vrot.lane.b32.xlu0 %v688, 96
        %v696 = vpop.permute.xlu0 %695
        %697 = vrot.lane.b32.xlu0 %v689, 96
        %v698 = vpop.permute.xlu0 %697
        %v699 = vsel %vm465, %v694, %v696
        %v700 = vsel %vm465, %v696, %v698
        %v704 = vadd.f32 %v683, %v699
        %v705 = vadd.f32 %v684, %v700
        %v706 = vadd.f32 %v685, %v698
        %709 = vrot.lane.b32.xlu0 %v400, 2
        %v710 = vpop.permute.xlu0 %709
        %711 = vrot.lane.b32.xlu0 %v401, 2
        %v712 = vpop.permute.xlu0 %711
        %vm713 = vcmask 15360
        %v714 = vsel %vm713, %v710, %v712
        %v718 = vmul.f32 %v704, %v710
        %v719 = vmul.f32 %v705, %v714
        %v720 = vmul.f32 %v706, %v712
        %724 = vrot.lane.b32.xlu0 %v718, 126
        %v725 = vpop.permute.xlu0 %724
        %726 = vrot.lane.b32.xlu0 %v719, 126
        %v727 = vpop.permute.xlu0 %726
        %728 = vrot.lane.b32.xlu0 %v720, 126
        %v729 = vpop.permute.xlu0 %728
        %vm730 = vcmask 1031168
        %v731 = vsel %vm730, %v725, %v727
        %v732 = vsel %vm730, %v727, %v729
        %v735 = vadd.f32 %v607, %v731
        %v736 = vadd.f32 %v608, %v732
        %v737 = vxor.u32 %v735, 2147483648
        %v738 = vxor.u32 %v736, 2147483648
        %v739 = vmul.f32 %v737, 1.442695
        %v740 = vpow.pop %v739
        %v741 = vmul.f32 %v738, 1.442695
        %v742 = vpow.pop %v741
        %v743 = vadd.f32 %v740, 1.0
        %v744 = vadd.f32 %v742, 1.0
        %v745 = vrcp.pop %v743
        %v746 = vmul.f32 1.0, %v745
        %v747 = vrcp.pop %v744
        %v748 = vmul.f32 1.0, %v747
        %v749 = vlaneseq
        %v750 = vshrl.u32 %v749, 7
        %v751 = vsub.s32 0, %v750
        %v752 = vrot.slane %v746, %v751
        %v753 = vlaneseq
        %v754 = vshrl.u32 %v753, 7
        %v755 = vsub.s32 0, %v754
        %v756 = vrot.slane %v748, %v755
        %v757 = vmul.f32 %v293, %v752
        %v758 = vmul.f32 %v294, %v756
        %759 = vst [vmem:[%s241] sm:$0xff] %v757
        %760 = vst [vmem:[%s241 + $0x8] sm:$0xff] %v758
        %s761 = sand.u32 %s121, 1
        %s762 = scalar_lea.sflag [#allocation5], %s761
        %s763 = sand.u32 %s121, 1
        %s764 = smul.addr %s763, 16
        %s765 = scalar_lea.vmem [#allocation10], %s764
        // Predicated region
        $region49: #{tpu_custom_call.1} parent=35 // pred_check
          %p766 = pneg %p131
        $region50: #{tpu_custom_call.1} parent=35 // pred_check_branch
          %768 = sbr.rel (%p766) target = $region52
        $region51: #{tpu_custom_call.1} parent=35 // pred_region
          %s770 = ssub.s32 256, 256
          %771 = vsyncadd %s762, %s770
          %s772 = smul.addr %s24, 2
          %s773 = smul.addr %s772, 128
          %s774 = scalar_lea.hbm %s4, %s773
          %s776 = sshll.u32 %s765, 4
          %s777 = int_to_ptr.vmem [resolvable:$true] %s776
          %779 = dma.vmem_to_hbm [thread:$0]  %s777, 256, %s774, %s762
        $region52: #{tpu_custom_call.1} parent=35 // pred_fallthru
          _
      $region36: #{tpu_custom_call.1} parent=5 // pred_fallthru
        _
      %p780 = scmp.le.s32.totalorder 2, %s19
      // Predicated region
      $region53: #{tpu_custom_call.1} parent=5 // pred_check
        %p781 = pneg %p780
      $region54: #{tpu_custom_call.1} parent=5 // pred_check_branch
        %783 = sbr.rel (%p781) target = $region56
      $region55: #{tpu_custom_call.1} parent=5 // pred_region
        %s784 = ssub.s32 %s19, 2
        // Predicated region
        $region57: #{tpu_custom_call.1} parent=55 // pred_check
          %p785 = pneg %p137
        $region58: #{tpu_custom_call.1} parent=55 // pred_check_branch
          %787 = sbr.rel (%p785) target = $region60
        $region59: #{tpu_custom_call.1} parent=55 // pred_region
          %s788 = sand.u32 %s122, 1
          %s789 = scalar_lea.sflag [#allocation5], %s788
          %s790 = sand.u32 %s122, 1
          %s791 = smul.addr %s790, 16
          %s792 = scalar_lea.vmem [#allocation10], %s791
          %793 = dma.done %s789, 256
        $region60: #{tpu_custom_call.1} parent=55 // pred_fallthru
          _
      $region56: #{tpu_custom_call.1} parent=5 // pred_fallthru
        _
    $region6: #{tpu_custom_call.1} parent=1 // loop_footer
      %s23 = sadd.s32 1, %s19
    $region7: #{tpu_custom_call.1} parent=1 // loop_footer_branch
      %18 = sbr.rel target = $region3
    $region8: #{tpu_custom_call.1} parent=1 // loop_exit
      _
    %794 = vsyncpa [#allocation4], 1
    %s795 = scalar_lea.sflag [#allocation4], 1
    %796 = vsyncpa %s795, 1
    %797 = vsyncpa [#allocation5], 1
    %s798 = scalar_lea.sflag [#allocation5], 1
    %799 = vsyncpa %s798, 1
    %800 = vsyncpa [#allocation6], 1
    %s801 = scalar_lea.sflag [#allocation6], 1
    %802 = vsyncpa %s801, 1
    %803 = vsyncpa [#allocation9], 1

</llo_original>
